<compile_context>
chip_gen: v7x
topology: tpu7x:2x2x1
jax: 0.10.0
libtpu: 0.0.40
codegen_flags: <defaults>
</compile_context>

<pallas_src>
import functools

import jax
import jax.numpy as jnp
from jax import lax
from jax.experimental import pallas as pl
from jax.experimental.pallas import tpu as pltpu

_LANES = 128
_NEG_BIG = -1e30


def _round_up(x, m):
    return ((x + m - 1) // m) * m


def _infonce_kernel(z_ref, zs_ref, zn_ref, out_ref, m_sc, l_sc, *,
                    inv_t, m_valid, tile_m, needs_mask):
    j = pl.program_id(1)
    last_j = pl.num_programs(1) - 1

    @pl.when(j == 0)
    def _init():
        m_sc[...] = jnp.full(m_sc.shape, -jnp.inf, dtype=jnp.float32)
        l_sc[...] = jnp.zeros_like(l_sc)

    # Scores of this query tile against this block of negatives: (tn, tm).
    # f32 MXU accumulation; 1/temperature applied to the f32 result (cheap
    # VPU filler; avoids re-rounding bf16 queries every step).
    neg = lax.dot_general(
        z_ref[...], zn_ref[...],
        dimension_numbers=(((1,), (1,)), ((), ())),
        preferred_element_type=jnp.float32,
    ) * inv_t

    def update(scores):
        # Lane-blocked online logsumexp: lane l accumulates all columns c
        # with c % 128 == l.  Per-step work is elementwise VPU max/add over
        # the tile_m // 128 lane groups — no cross-lane XLU reductions here.
        n_grp = tile_m // _LANES
        blk_max = scores[:, :_LANES]
        for g in range(1, n_grp):
            blk_max = jnp.maximum(blk_max, scores[:, g * _LANES:(g + 1) * _LANES])
        m_prev = m_sc[...]
        m_new = jnp.maximum(m_prev, blk_max)
        s = jnp.exp(scores[:, :_LANES] - m_new)
        for g in range(1, n_grp):
            s = s + jnp.exp(scores[:, g * _LANES:(g + 1) * _LANES] - m_new)
        l_sc[...] = jnp.exp(m_prev - m_new) * l_sc[...] + s
        m_sc[...] = m_new

    if needs_mask:
        # Only the last M tile can contain out-of-range (ragged) columns;
        # gate the iota/compare/select so steady-state steps skip it.
        @pl.when(j != last_j)
        def _plain():
            update(neg)

        @pl.when(j == last_j)
        def _masked():
            col = j * tile_m + lax.broadcasted_iota(jnp.int32, neg.shape, 1)
            update(jnp.where(col < m_valid, neg, _NEG_BIG))
    else:
        update(neg)

    @pl.when(j == last_j)
    def _finalize():
        # Positive logit, computed once per N tile (same z/z_sim block for
        # every j since their index maps ignore j).
        pos = jnp.sum(
            z_ref[...].astype(jnp.float32) * zs_ref[...].astype(jnp.float32),
            axis=1, keepdims=True) * inv_t                          # (tn, 1)
        m_lane = m_sc[...]
        l_lane = l_sc[...]
        # Single cross-lane collapse per N tile; fold in the positive.
        m_row = jnp.maximum(jnp.max(m_lane, axis=1, keepdims=True), pos)
        l_row = (jnp.sum(l_lane * jnp.exp(m_lane - m_row), axis=1, keepdims=True)
                 + jnp.exp(pos - m_row))
        out_ref[...] = m_row + jnp.log(l_row) - pos   # per-row  -pos + logsumexp


def info_nce_loss(z, z_sim, z_neg, temperature):
    """Pallas implementation of InfoNceLoss.forward. Returns a scalar f32."""
    assert z.ndim == 2 and z_sim.shape == z.shape and z_neg.ndim == 2
    N, D = z.shape
    M, D2 = z_neg.shape
    assert D2 == D

    itemsize = jnp.dtype(z.dtype).itemsize
    sub = 8 if itemsize >= 4 else 16                 # f32 vs bf16 sublane pack

    # Zero-pad the hidden dim to a lane multiple only when needed (zeros are
    # inert in every dot product).  N / M edges are handled as ragged last
    # blocks + in-kernel mask — no padded copies of z_neg (the big operand).
    d_pad = _round_up(D, 128)
    if d_pad != D:
        z = jnp.pad(z, ((0, 0), (0, d_pad - D)))
        z_sim = jnp.pad(z_sim, ((0, 0), (0, d_pad - D)))
        z_neg = jnp.pad(z_neg, ((0, 0), (0, d_pad - D)))

    # D-aware tile selection against this chip's actual VMEM capacity
    # (64 MiB/TC on v7x, 128 MiB on v5e/v6e).  Prefer a large tn first
    # (halving z_neg HBM re-streaming), then grow tm to cut per-step overhead.
    vmem_cap = 64 * 1024 * 1024
    try:
        vmem_cap = int(pltpu.get_tpu_info().vmem_capacity_bytes)
    except Exception:
        pass
    budget = int(vmem_cap * 0.55)

    n_cap = _round_up(N, sub)
    m_cap = _round_up(M, 128)

    def footprint(tn, tm):
        tiles = 2 * (2 * tn + tm) * d_pad * itemsize    # double-buffered blocks
        stats = 2 * tn * _LANES * 4                     # lane-blocked m/l stats
        return tiles + stats + 2 * tn * 4               # + tiny output block

    tn = sub
    for c in (1024, 512, 384, 256, 128, 64, 32, 16, 8):
        if c % sub:
            continue
        cand = min(c, n_cap)
        if footprint(cand, min(256, m_cap)) <= budget:
            tn = cand
            break
    tm = min(128, m_cap)
    for c in (1024, 512, 256, 128):
        cand = min(c, m_cap)
        if footprint(tn, cand) <= budget:
            tm = cand
            break

    grid = (pl.cdiv(N, tn), pl.cdiv(M, tm))
    needs_mask = (M % tm) != 0

    vmem_limit = int(min(vmem_cap * 9 // 10, footprint(tn, tm) + (16 << 20)))
    vmem_limit = min(max(vmem_limit, 32 << 20), vmem_cap)

    kernel = functools.partial(
        _infonce_kernel,
        inv_t=1.0 / float(temperature),
        m_valid=M,
        tile_m=tm,
        needs_mask=needs_mask,
    )

    cost = pl.CostEstimate(
        flops=2 * N * M * d_pad + 2 * N * d_pad,
        transcendentals=N * grid[1] * tm + 3 * N,
        bytes_accessed=(z.size + z_sim.size) * itemsize
        + z_neg.size * itemsize * grid[0] + N * 4,
    )

    row_loss = pl.pallas_call(
        kernel,
        out_shape=jax.ShapeDtypeStruct((N, 1), jnp.float32),
        grid_spec=pltpu.PrefetchScalarGridSpec(
            num_scalar_prefetch=0,
            grid=grid,
            in_specs=[
                pl.BlockSpec((tn, d_pad), lambda i, j: (i, 0)),   # z (resident over j)
                pl.BlockSpec((tn, d_pad), lambda i, j: (i, 0)),   # z_sim (resident)
                pl.BlockSpec((tm, d_pad), lambda i, j: (j, 0)),   # z_neg (streamed)
            ],
            out_specs=pl.BlockSpec((tn, 1), lambda i, j: (i, 0)),
            scratch_shapes=[
                pltpu.VMEM((tn, _LANES), jnp.float32),   # per-lane running max
                pltpu.VMEM((tn, _LANES), jnp.float32),   # per-lane running sum-exp
            ],
        ),
        compiler_params=pltpu.CompilerParams(
            dimension_semantics=("parallel", "arbitrary"),
            vmem_limit_bytes=vmem_limit,
        ),
        cost_estimate=cost,
    )(z, z_sim, z_neg)

    # Tiny final mean stays in the wrapper.
    return jnp.mean(row_loss[:, 0])


def _reference(z, z_sim, z_neg, temperature):
    neg = jnp.einsum('ij,kj->ik', z, z_neg)
    pos = jnp.einsum('ij,ij->i', z, z_sim)
    neg_and_pos = jnp.concatenate([neg, pos[:, None]], axis=1)
    loss_pos = -pos / temperature
    loss_neg = jax.scipy.special.logsumexp(neg_and_pos / temperature, axis=1)
    return jnp.mean(loss_pos + loss_neg)


if __name__ == "__main__":
    temperature = 0.5
    key = jax.random.PRNGKey(0)
    k1, k2, k3, k4, k5, k6 = jax.random.split(key, 6)

    # Small canonical shape (flattened feature rows, as the module consumes).
    z = jax.random.normal(k1, (8, 32), dtype=jnp.float32)
    z_sim = jax.random.normal(k2, (8, 32), dtype=jnp.float32)
    z_neg = jax.random.normal(k3, (8, 32), dtype=jnp.float32)
    loss = jax.block_until_ready(info_nce_loss(z, z_sim, z_neg, temperature))
    ref = jax.block_until_ready(_reference(z, z_sim, z_neg, temperature))
    assert jnp.allclose(loss, ref, rtol=1e-4, atol=1e-4), (loss, ref)

    # Ragged multi-tile path (several M blocks, masked last block, lane groups).
    z2 = jax.random.normal(k4, (40, 96), dtype=jnp.float32)
    z2_sim = jax.random.normal(k5, (40, 96), dtype=jnp.float32)
    z2_neg = jax.random.normal(k6, (1500, 96), dtype=jnp.float32)
    loss2 = jax.block_until_ready(info_nce_loss(z2, z2_sim, z2_neg, temperature))
    ref2 = jax.block_until_ready(_reference(z2, z2_sim, z2_neg, temperature))
    assert jnp.allclose(loss2, ref2, rtol=1e-4, atol=1e-4), (loss2, ref2)

    print("KERNEL_OK")
</pallas_src>

<mosaic_0001>
module attributes {stable_mosaic.version = 11 : i64} {
  func.func @_infonce_kernel(%arg0: i32, %arg1: i32, %arg2: memref<8x128xf32, #tpu.memory_space<vmem>>, %arg3: memref<8x128xf32, #tpu.memory_space<vmem>>, %arg4: memref<128x128xf32, #tpu.memory_space<vmem>>, %arg5: memref<8x1xf32, #tpu.memory_space<vmem>>, %arg6: memref<8x128xf32, #tpu.memory_space<vmem>>, %arg7: memref<8x128xf32, #tpu.memory_space<vmem>>) attributes {dimension_semantics = [#tpu.dimension_semantics<parallel>, #tpu.dimension_semantics<arbitrary>], iteration_bounds = array<i64: 1, 1>, scalar_prefetch = 0 : i64, scratch_operands = 2 : i64, tpu.core_type = #tpu.core_type<tc>, window_params = [{transform_indices = @transform_0, window_bounds = array<i64: 8, 128>}, {transform_indices = @transform_1, window_bounds = array<i64: 8, 128>}, {transform_indices = @transform_2, window_bounds = array<i64: 128, 128>}, {transform_indices = @transform_3, window_bounds = array<i64: 8, 1>}]} {
    %c0_i32 = arith.constant 0 : i32
    %0 = arith.cmpi eq, %arg1, %c0_i32 : i32
    %1 = arith.extui %0 : i1 to i32
    %c0_i32_0 = arith.constant 0 : i32
    %2 = arith.cmpi ne, %1, %c0_i32_0 : i32
    scf.if %2 {
      %cst_11 = arith.constant 0xFF800000 : f32
      %17 = vector.broadcast %cst_11 : f32 to vector<8x128xf32>
      %c0_12 = arith.constant 0 : index
      %c0_13 = arith.constant 0 : index
      %18 = vector.load %arg6[%c0_12, %c0_13] : memref<8x128xf32, #tpu.memory_space<vmem>>, vector<8x128xf32>
      tpu.vector_store %arg6[%c0_12, %c0_13], %17 {strides = array<i32>} : memref<8x128xf32, #tpu.memory_space<vmem>>, vector<8x128xf32>,
      %cst_14 = arith.constant 0.000000e+00 : f32
      %19 = vector.broadcast %cst_14 : f32 to vector<8x128xf32>
      %c0_15 = arith.constant 0 : index
      %c0_16 = arith.constant 0 : index
      %20 = vector.load %arg7[%c0_15, %c0_16] : memref<8x128xf32, #tpu.memory_space<vmem>>, vector<8x128xf32>
      tpu.vector_store %arg7[%c0_15, %c0_16], %19 {strides = array<i32>} : memref<8x128xf32, #tpu.memory_space<vmem>>, vector<8x128xf32>,
    } else {
    }
    %c0 = arith.constant 0 : index
    %c0_1 = arith.constant 0 : index
    %3 = vector.load %arg2[%c0, %c0_1] : memref<8x128xf32, #tpu.memory_space<vmem>>, vector<8x128xf32>
    %c0_2 = arith.constant 0 : index
    %c0_3 = arith.constant 0 : index
    %4 = vector.load %arg4[%c0_2, %c0_3] : memref<128x128xf32, #tpu.memory_space<vmem>>, vector<128x128xf32>
    %cst = arith.constant dense<0.000000e+00> : vector<8x128xf32>
    %5 = tpu.matmul %3, %4, %cst {dimension_numbers = #tpu.dot_dimension_numbers<[1], [1], [0], [0], [0, 0, 1, 0], [], []>} : vector<8x128xf32>, vector<128x128xf32>, vector<8x128xf32> -> vector<8x128xf32>
    %cst_4 = arith.constant 2.000000e+00 : f32
    %6 = vector.broadcast %cst_4 : f32 to vector<8x128xf32>
    %7 = arith.mulf %5, %6 : vector<8x128xf32>
    %c0_i32_5 = arith.constant 0 : i32
    %8 = arith.cmpi ne, %arg1, %c0_i32_5 : i32
    %9 = arith.extui %8 : i1 to i32
    %c0_i32_6 = arith.constant 0 : i32
    %10 = arith.cmpi ne, %9, %c0_i32_6 : i32
    scf.if %10 {
      %c0_11 = arith.constant 0 : index
      %c0_12 = arith.constant 0 : index
      %17 = vector.load %arg6[%c0_11, %c0_12] : memref<8x128xf32, #tpu.memory_space<vmem>>, vector<8x128xf32>
      %18 = arith.maximumf %17, %7 : vector<8x128xf32>
      %19 = arith.subf %7, %18 : vector<8x128xf32>
      %20 = math.exp %19 : vector<8x128xf32>
      %21 = arith.subf %17, %18 : vector<8x128xf32>
      %22 = math.exp %21 : vector<8x128xf32>
      %c0_13 = arith.constant 0 : index
      %c0_14 = arith.constant 0 : index
      %23 = vector.load %arg7[%c0_13, %c0_14] : memref<8x128xf32, #tpu.memory_space<vmem>>, vector<8x128xf32>
      %24 = arith.mulf %22, %23 : vector<8x128xf32>
      %25 = arith.addf %24, %20 : vector<8x128xf32>
      %c0_15 = arith.constant 0 : index
      %c0_16 = arith.constant 0 : index
      %26 = vector.load %arg7[%c0_15, %c0_16] : memref<8x128xf32, #tpu.memory_space<vmem>>, vector<8x128xf32>
      tpu.vector_store %arg7[%c0_15, %c0_16], %25 {strides = array<i32>} : memref<8x128xf32, #tpu.memory_space<vmem>>, vector<8x128xf32>,
      %c0_17 = arith.constant 0 : index
      %c0_18 = arith.constant 0 : index
      %27 = vector.load %arg6[%c0_17, %c0_18] : memref<8x128xf32, #tpu.memory_space<vmem>>, vector<8x128xf32>
      tpu.vector_store %arg6[%c0_17, %c0_18], %18 {strides = array<i32>} : memref<8x128xf32, #tpu.memory_space<vmem>>, vector<8x128xf32>,
    } else {
    }
    %c0_i32_7 = arith.constant 0 : i32
    %11 = arith.cmpi eq, %arg1, %c0_i32_7 : i32
    %12 = arith.extui %11 : i1 to i32
    %c0_i32_8 = arith.constant 0 : i32
    %13 = arith.cmpi ne, %12, %c0_i32_8 : i32
    scf.if %13 {
      %c128_i32 = arith.constant 128 : i32
      %17 = arith.muli %arg1, %c128_i32 : i32
      %18 = tpu.iota {dimensions = array<i32: 1>} : vector<8x128xi32>
      %19 = vector.broadcast %17 : i32 to vector<8x128xi32>
      %20 = arith.addi %19, %18 : vector<8x128xi32>
      %c8_i32 = arith.constant 8 : i32
      %21 = vector.broadcast %c8_i32 : i32 to vector<8x128xi32>
      %22 = arith.cmpi slt, %20, %21 : vector<8x128xi32>
      %cst_11 = arith.constant -1.000000e+30 : f32
      %23 = vector.broadcast %cst_11 : f32 to vector<8x128xf32>
      %24 = arith.select %22, %7, %23 : vector<8x128xi1>, vector<8x128xf32>
      %c0_12 = arith.constant 0 : index
      %c0_13 = arith.constant 0 : index
      %25 = vector.load %arg6[%c0_12, %c0_13] : memref<8x128xf32, #tpu.memory_space<vmem>>, vector<8x128xf32>
      %26 = arith.maximumf %25, %24 : vector<8x128xf32>
      %27 = arith.subf %24, %26 : vector<8x128xf32>
      %28 = math.exp %27 : vector<8x128xf32>
      %29 = arith.subf %25, %26 : vector<8x128xf32>
      %30 = math.exp %29 : vector<8x128xf32>
      %c0_14 = arith.constant 0 : index
      %c0_15 = arith.constant 0 : index
      %31 = vector.load %arg7[%c0_14, %c0_15] : memref<8x128xf32, #tpu.memory_space<vmem>>, vector<8x128xf32>
      %32 = arith.mulf %30, %31 : vector<8x128xf32>
      %33 = arith.addf %32, %28 : vector<8x128xf32>
      %c0_16 = arith.constant 0 : index
      %c0_17 = arith.constant 0 : index
      %34 = vector.load %arg7[%c0_16, %c0_17] : memref<8x128xf32, #tpu.memory_space<vmem>>, vector<8x128xf32>
      tpu.vector_store %arg7[%c0_16, %c0_17], %33 {strides = array<i32>} : memref<8x128xf32, #tpu.memory_space<vmem>>, vector<8x128xf32>,
      %c0_18 = arith.constant 0 : index
      %c0_19 = arith.constant 0 : index
      %35 = vector.load %arg6[%c0_18, %c0_19] : memref<8x128xf32, #tpu.memory_space<vmem>>, vector<8x128xf32>
      tpu.vector_store %arg6[%c0_18, %c0_19], %26 {strides = array<i32>} : memref<8x128xf32, #tpu.memory_space<vmem>>, vector<8x128xf32>,
    } else {
    }
    %c0_i32_9 = arith.constant 0 : i32
    %14 = arith.cmpi eq, %arg1, %c0_i32_9 : i32
    %15 = arith.extui %14 : i1 to i32
    %c0_i32_10 = arith.constant 0 : i32
    %16 = arith.cmpi ne, %15, %c0_i32_10 : i32
    scf.if %16 {
      %c0_11 = arith.constant 0 : index
      %c0_12 = arith.constant 0 : index
      %17 = vector.load %arg2[%c0_11, %c0_12] : memref<8x128xf32, #tpu.memory_space<vmem>>, vector<8x128xf32>
      %c0_13 = arith.constant 0 : index
      %c0_14 = arith.constant 0 : index
      %18 = vector.load %arg3[%c0_13, %c0_14] : memref<8x128xf32, #tpu.memory_space<vmem>>, vector<8x128xf32>
      %19 = arith.mulf %17, %18 : vector<8x128xf32>
      %cst_15 = arith.constant dense<0.000000e+00> : vector<8xf32>
      %20 = vector.multi_reduction <add>, %19, %cst_15 [1] : vector<8x128xf32> to vector<8xf32>
      %21 = vector.shape_cast %20 : vector<8xf32> to vector<8x1xf32>
      %cst_16 = arith.constant 2.000000e+00 : f32
      %22 = vector.broadcast %cst_16 : f32 to vector<8x1xf32>
      %23 = arith.mulf %21, %22 : vector<8x1xf32>
      %c0_17 = arith.constant 0 : index
      %c0_18 = arith.constant 0 : index
      %24 = vector.load %arg6[%c0_17, %c0_18] : memref<8x128xf32, #tpu.memory_space<vmem>>, vector<8x128xf32>
      %c0_19 = arith.constant 0 : index
      %c0_20 = arith.constant 0 : index
      %25 = vector.load %arg7[%c0_19, %c0_20] : memref<8x128xf32, #tpu.memory_space<vmem>>, vector<8x128xf32>
      %cst_21 = arith.constant dense<0xFF800000> : vector<8xf32>
      %26 = vector.multi_reduction <maximumf>, %24, %cst_21 [1] : vector<8x128xf32> to vector<8xf32>
      %27 = vector.shape_cast %26 : vector<8xf32> to vector<8x1xf32>
      %28 = arith.maximumf %27, %23 : vector<8x1xf32>
      %29 = vector.broadcast %28 : vector<8x1xf32> to vector<8x128xf32>
      %30 = arith.subf %24, %29 : vector<8x128xf32>
      %31 = math.exp %30 : vector<8x128xf32>
      %32 = arith.mulf %25, %31 : vector<8x128xf32>
      %cst_22 = arith.constant dense<0.000000e+00> : vector<8xf32>
      %33 = vector.multi_reduction <add>, %32, %cst_22 [1] : vector<8x128xf32> to vector<8xf32>
      %34 = vector.shape_cast %33 : vector<8xf32> to vector<8x1xf32>
      %35 = arith.subf %23, %28 : vector<8x1xf32>
      %36 = math.exp %35 : vector<8x1xf32>
      %37 = arith.addf %34, %36 : vector<8x1xf32>
      %38 = math.log %37 : vector<8x1xf32>
      %39 = arith.addf %28, %38 : vector<8x1xf32>
      %40 = arith.subf %39, %23 : vector<8x1xf32>
      %c0_23 = arith.constant 0 : index
      %c0_24 = arith.constant 0 : index
      %41 = vector.load %arg5[%c0_23, %c0_24] : memref<8x1xf32, #tpu.memory_space<vmem>>, vector<8x1xf32>
      tpu.vector_store %arg5[%c0_23, %c0_24], %40 {strides = array<i32>} : memref<8x1xf32, #tpu.memory_space<vmem>>, vector<8x1xf32>,
    } else {
    }
    return
  }
  func.func @transform_0(%arg0: i32, %arg1: i32) -> (i32, i32) {
    %c0_i32 = arith.constant 0 : i32
    %c0_i32_0 = arith.constant 0 : i32
    return %arg0, %c0_i32 : i32, i32
  }
  func.func @transform_1(%arg0: i32, %arg1: i32) -> (i32, i32) {
    %c0_i32 = arith.constant 0 : i32
    %c0_i32_0 = arith.constant 0 : i32
    return %arg0, %c0_i32 : i32, i32
  }
  func.func @transform_2(%arg0: i32, %arg1: i32) -> (i32, i32) {
    %c0_i32 = arith.constant 0 : i32
    %c0_i32_0 = arith.constant 0 : i32
    return %arg1, %c0_i32 : i32, i32
  }
  func.func @transform_3(%arg0: i32, %arg1: i32) -> (i32, i32) {
    %c0_i32 = arith.constant 0 : i32
    %c0_i32_0 = arith.constant 0 : i32
    return %arg0, %c0_i32 : i32, i32
  }
}

</mosaic_0001>

<llo_original>
// kernel: tpu_custom_call.1
$region0: #{tpu_custom_call.1}
  #allocation0 [shape = 'u32[]', space=smem, size = 0x4, offset = 0x4, fixed_abs, tag = 'smem constant byte address 0x4 - core index']
  #allocation1 [shape = 'u32[144,128]{1,0:T(1,128)}', space=vmem, size = 0x12000, scoped, tag = 'internal scratch']
  #allocation2 [shape = 'f32[8,128]{1,0:T(8,128)}', space=vmem, size = 0x1000, scoped, tag = 'scratch operand']
  #allocation3 [shape = 'f32[8,128]{1,0:T(8,128)}', space=vmem, size = 0x1000, scoped, tag = 'scratch operand']
  %s0 = inlined_call_operand.hbm [shape: f32[8,128], index: 0, kind: input, shape index: {}]
  %s1 = inlined_call_operand.hbm [shape: f32[8,128], index: 1, kind: input, shape index: {}]
  %s2 = inlined_call_operand.hbm [shape: f32[8,128], index: 2, kind: input, shape index: {}]
  %s3 = inlined_call_operand.vmem [shape: f32[8,1], index: 3, kind: output, shape index: {}]
  %s4 = sld [smem:[#allocation0]]
  $region46: #{tpu_custom_call.1} parent=0
    _
  %s6 = ssub.s32 1, %s4
  %s7 = scalar_select 0, %s6, %s4
  $region1: #{tpu_custom_call.1} parent=0
    #allocation4 [shape = 'u8[4096]{0}', space=vmem, size = 0x1000, scoped, tag = 'input window, operand 0, single buffered']
    #allocation5 [shape = 's32[1]{0}', space=sflag, size = 0x4, scoped, tag = 'scoped memory for tpu_custom_call.1']
    #allocation6 [shape = 'u8[4096]{0}', space=vmem, size = 0x1000, scoped, tag = 'input window, operand 1, single buffered']
    #allocation7 [shape = 's32[1]{0}', space=sflag, size = 0x4, scoped, tag = 'scoped memory for tpu_custom_call.1']
    #allocation8 [shape = 'u8[65536]{0}', space=vmem, size = 0x10000, scoped, tag = 'input window, operand 2, single buffered']
    %8 = vsyncpa [#allocation5], 0
    %9 = vsyncpa [#allocation7], 0
    // Predicated region
    $region2: #{tpu_custom_call.1} parent=1 // pred_check
      _
    $region3: #{tpu_custom_call.1} parent=1 // pred_check_branch
      %11 = sbr.rel (0) target = $region5
    $region4: #{tpu_custom_call.1} parent=1 // pred_region
      %s13 = ssub.s32 128, 128
      %14 = vsyncadd [#allocation5], %s13
      %s16 = sshll.u32 [#allocation4], 4
      %s17 = int_to_ptr.vmem [resolvable:$true] %s16
      %19 = dma.hbm_to_vmem [thread:$0]  %s0, 128, %s17, [#allocation5]
    $region5: #{tpu_custom_call.1} parent=1 // pred_fallthru
      _
    // Predicated region
    $region6: #{tpu_custom_call.1} parent=1 // pred_check
      _
    $region7: #{tpu_custom_call.1} parent=1 // pred_check_branch
      %21 = sbr.rel (0) target = $region9
    $region8: #{tpu_custom_call.1} parent=1 // pred_region
      %s23 = ssub.s32 128, 128
      %24 = vsyncadd [#allocation7], %s23
      %s26 = sshll.u32 [#allocation6], 4
      %s27 = int_to_ptr.vmem [resolvable:$true] %s26
      %29 = dma.hbm_to_vmem [thread:$0]  %s1, 128, %s27, [#allocation7]
    $region9: #{tpu_custom_call.1} parent=1 // pred_fallthru
      _
    // Predicated region
    $region10: #{tpu_custom_call.1} parent=1 // pred_check
      _
    $region11: #{tpu_custom_call.1} parent=1 // pred_check_branch
      %31 = sbr.rel (0) target = $region13
    $region12: #{tpu_custom_call.1} parent=1 // pred_region
      %s33 = ssub.s32 2048, 128
      %34 = vsyncadd [#allocation7], %s33
      %s35 = sshll.u32 [#allocation8], 4
      %s36 = int_to_ptr.vmem [resolvable:$true] %s35
      %41 = dma.hbm_to_vmem [thread:$0]  %s2, 128, %s36, [#allocation7], 128, 128, 8
    $region13: #{tpu_custom_call.1} parent=1 // pred_fallthru
      _
    // Predicated region
    $region14: #{tpu_custom_call.1} parent=1 // pred_check
      _
    $region15: #{tpu_custom_call.1} parent=1 // pred_check_branch
      %43 = sbr.rel (0) target = $region17
    $region16: #{tpu_custom_call.1} parent=1 // pred_region
      %44 = dma.done [#allocation5], 128
    $region17: #{tpu_custom_call.1} parent=1 // pred_fallthru
      _
    // Predicated region
    $region18: #{tpu_custom_call.1} parent=1 // pred_check
      _
    $region19: #{tpu_custom_call.1} parent=1 // pred_check_branch
      %46 = sbr.rel (0) target = $region21
    $region20: #{tpu_custom_call.1} parent=1 // pred_region
      %47 = dma.done [#allocation7], 128
    $region21: #{tpu_custom_call.1} parent=1 // pred_fallthru
      _
    // Predicated region
    $region22: #{tpu_custom_call.1} parent=1 // pred_check
      _
    $region23: #{tpu_custom_call.1} parent=1 // pred_check_branch
      %49 = sbr.rel (0) target = $region25
    $region24: #{tpu_custom_call.1} parent=1 // pred_region
      %50 = dma.done [#allocation7], 2048
    $region25: #{tpu_custom_call.1} parent=1 // pred_fallthru
      _
    %p51 = scmp.eq.s32.totalorder 0, 0
    // Predicated region
    $region26: #{tpu_custom_call.1} parent=1 // pred_check
      %p52 = pneg %p51
    $region27: #{tpu_custom_call.1} parent=1 // pred_check_branch
      %54 = sbr.rel (%p52) target = $region29
    $region28: #{tpu_custom_call.1} parent=1 // pred_region
      %55 = vst [vmem:[#allocation2] sm:$0xff] -inf
      %56 = vst [vmem:[#allocation3] sm:$0xff] 0.0
    $region29: #{tpu_custom_call.1} parent=1 // pred_fallthru
      _
    %v57 = vld [vmem:[#allocation4] sm:$0xff]
    %v58 = vld [vmem:[#allocation8] sm:$0xff]
    %v59 = vld [vmem:[#allocation8 + $0x8] sm:$0xff]
    %v60 = vld [vmem:[#allocation8 + $0x10] sm:$0xff]
    %v61 = vld [vmem:[#allocation8 + $0x18] sm:$0xff]
    %v62 = vld [vmem:[#allocation8 + $0x20] sm:$0xff]
    %v63 = vld [vmem:[#allocation8 + $0x28] sm:$0xff]
    %v64 = vld [vmem:[#allocation8 + $0x30] sm:$0xff]
    %v65 = vld [vmem:[#allocation8 + $0x38] sm:$0xff]
    %v66 = vld [vmem:[#allocation8 + $0x40] sm:$0xff]
    %v67 = vld [vmem:[#allocation8 + $0x48] sm:$0xff]
    %v68 = vld [vmem:[#allocation8 + $0x50] sm:$0xff]
    %v69 = vld [vmem:[#allocation8 + $0x58] sm:$0xff]
    %v70 = vld [vmem:[#allocation8 + $0x60] sm:$0xff]
    %v71 = vld [vmem:[#allocation8 + $0x68] sm:$0xff]
    %v72 = vld [vmem:[#allocation8 + $0x70] sm:$0xff]
    %v73 = vld [vmem:[#allocation8 + $0x78] sm:$0xff]
    %74 = vmatprep.subr.mxu0 0.0
    %75 = vmatpush1.xpose.msra.mxu0 %v58
    %76 = vmatprep.subr.mxu0 0.0
    %77 = vmatpush1.xpose.msra.mxu0 %v59
    %78 = vmatprep.subr.mxu0 0.0
    %79 = vmatpush1.xpose.msra.mxu0 %v60
    %80 = vmatprep.subr.mxu0 0.0
    %81 = vmatpush1.xpose.msra.mxu0 %v61
    %82 = vmatprep.subr.mxu0 0.0
    %83 = vmatpush1.xpose.msra.mxu0 %v62
    %84 = vmatprep.subr.mxu0 0.0
    %85 = vmatpush1.xpose.msra.mxu0 %v63
    %86 = vmatprep.subr.mxu0 0.0
    %87 = vmatpush1.xpose.msra.mxu0 %v64
    %88 = vmatprep.subr.mxu0 0.0
    %89 = vmatpush1.xpose.msra.mxu0 %v65
    %90 = vmatprep.subr.mxu0 0.0
    %91 = vmatpush1.xpose.msra.mxu0 %v66
    %92 = vmatprep.subr.mxu0 0.0
    %93 = vmatpush1.xpose.msra.mxu0 %v67
    %94 = vmatprep.subr.mxu0 0.0
    %95 = vmatpush1.xpose.msra.mxu0 %v68
    %96 = vmatprep.subr.mxu0 0.0
    %97 = vmatpush1.xpose.msra.mxu0 %v69
    %98 = vmatprep.subr.mxu0 0.0
    %99 = vmatpush1.xpose.msra.mxu0 %v70
    %100 = vmatprep.subr.mxu0 0.0
    %101 = vmatpush1.xpose.msra.mxu0 %v71
    %102 = vmatprep.subr.mxu0 0.0
    %103 = vmatpush1.xpose.msra.mxu0 %v72
    %104 = vmatprep.subr.mxu0 0.0
    %105 = vmatpush1.xpose.msra.mxu0 %v73
    %106 = vmatprep.subr.mxu0 0.0
    %107 = vmatpush1.xpose.msra.mxu0 0.0
    %108 = vmatprep.subr.mxu0 0.0
    %109 = vmatpush1.xpose.msra.mxu0 0.0
    %110 = vmatprep.subr.mxu0 0.0
    %111 = vmatpush1.xpose.msra.mxu0 0.0
    %112 = vmatprep.subr.mxu0 0.0
    %113 = vmatpush1.xpose.msra.mxu0 0.0
    %114 = vmatprep.subr.mxu0 0.0
    %115 = vmatpush1.xpose.msra.mxu0 0.0
    %116 = vmatprep.subr.mxu0 0.0
    %117 = vmatpush1.xpose.msra.mxu0 0.0
    %118 = vmatprep.subr.mxu0 0.0
    %119 = vmatpush1.xpose.msra.mxu0 0.0
    %120 = vmatprep.subr.mxu0 0.0
    %121 = vmatpush1.xpose.msra.mxu0 0.0
    %122 = vmatprep.subr.mxu0 0.0
    %123 = vmatpush1.xpose.msra.mxu0 0.0
    %124 = vmatprep.subr.mxu0 0.0
    %125 = vmatpush1.xpose.msra.mxu0 0.0
    %126 = vmatprep.subr.mxu0 0.0
    %127 = vmatpush1.xpose.msra.mxu0 0.0
    %128 = vmatprep.subr.mxu0 0.0
    %129 = vmatpush1.xpose.msra.mxu0 0.0
    %130 = vmatprep.subr.mxu0 0.0
    %131 = vmatpush1.xpose.msra.mxu0 0.0
    %132 = vmatprep.subr.mxu0 0.0
    %133 = vmatpush1.xpose.msra.mxu0 0.0
    %134 = vmatprep.subr.mxu0 0.0
    %135 = vmatpush1.xpose.msra.mxu0 0.0
    %136 = vmatprep.subr.mxu0 0.0
    %137 = vmatpush1.xpose.msra.mxu0 0.0
    %138 = vmatprep.mubr.f32.mxu0 0.0
    %139 = vmatmul.mubr.f32.gmra.mrb[0].mxu0 %v57
    %v140 = vpop.f32.mrb[0].mxu0
    %v141 = vadd.f32 0.0, %v140
    %v142 = vpop.f32.mrb[0].mxu0
    %143 = vdwg.mxu0
    %v144 = vmul.f32 %v141, 2.0
    %p145 = scmp.ne.s32.totalorder 0, 0
    // Predicated region
    $region30: #{tpu_custom_call.1} parent=1 // pred_check
      %p146 = pneg %p145
    $region31: #{tpu_custom_call.1} parent=1 // pred_check_branch
      %148 = sbr.rel (%p146) target = $region33
    $region32: #{tpu_custom_call.1} parent=1 // pred_region
      %v149 = vld [vmem:[#allocation2] sm:$0xff]
      %v150 = vmax.f32 %v149, %v144
      %v151 = vsub.f32 %v144, %v150
      %v152 = vmul.f32 %v151, 1.442695
      %v153 = vpow.pop %v152
      %v154 = vsub.f32 %v149, %v150
      %v155 = vmul.f32 %v154, 1.442695
      %v156 = vpow.pop %v155
      %v157 = vld [vmem:[#allocation3] sm:$0xff]
      %v158 = vmul.f32 %v156, %v157
      %v159 = vadd.f32 %v158, %v153
      %160 = vst [vmem:[#allocation3] sm:$0xff] %v159
      %161 = vst [vmem:[#allocation2] sm:$0xff] %v150
    $region33: #{tpu_custom_call.1} parent=1 // pred_fallthru
      _
    // Predicated region
    $region34: #{tpu_custom_call.1} parent=1 // pred_check
      %p162 = pneg %p51
    $region35: #{tpu_custom_call.1} parent=1 // pred_check_branch
      %164 = sbr.rel (%p162) target = $region37
    $region36: #{tpu_custom_call.1} parent=1 // pred_region
      %s165 = smul.u32 0, 128
      %v166 = vlaneseq
      %v167 = vand.u32 %v166, 127
      %v168 = vstv %s165
      %v169 = vadd.s32 %v168, %v167
      %vm170 = vcmp.lt.s32.totalorder %v169, 8
      %v171 = vsel %vm170, %v144, -1e+30
      %v172 = vld [vmem:[#allocation2] sm:$0xff]
      %v173 = vmax.f32 %v172, %v171
      %v174 = vsub.f32 %v171, %v173
      %v175 = vmul.f32 %v174, 1.442695
      %v176 = vpow.pop %v175
      %v177 = vsub.f32 %v172, %v173
      %v178 = vmul.f32 %v177, 1.442695
      %v179 = vpow.pop %v178
      %v180 = vld [vmem:[#allocation3] sm:$0xff]
      %v181 = vmul.f32 %v179, %v180
      %v182 = vadd.f32 %v181, %v176
      %183 = vst [vmem:[#allocation3] sm:$0xff] %v182
      %184 = vst [vmem:[#allocation2] sm:$0xff] %v173
      %v185 = vld [vmem:[#allocation4] sm:$0xff]
      %v186 = vld [vmem:[#allocation6] sm:$0xff]
      %v187 = vmul.f32 %v185, %v186
      %188 = vadd.xlane.f32.xlu0 %v187
      %v189 = vpop.xlane.xlu0 %188
      %v190 = vmul.f32 %v189, 2.0
      %v191 = vld [vmem:[#allocation2] sm:$0xff]
      %v192 = vld [vmem:[#allocation3] sm:$0xff]
      %193 = vmax.xlane.f32.xlu0 %v191
      %v194 = vpop.xlane.xlu0 %193
      %v195 = vmax.f32 %v194, %v190
      %v196 = vsub.f32 %v191, %v195
      %v197 = vmul.f32 %v196, 1.442695
      %v198 = vpow.pop %v197
      %v199 = vmul.f32 %v192, %v198
      %200 = vadd.xlane.f32.xlu0 %v199
      %v201 = vpop.xlane.xlu0 %200
      %v202 = vsub.f32 %v190, %v195
      %v203 = vmul.f32 %v202, 1.442695
      %v204 = vpow.pop %v203
      %v205 = vadd.f32 %v201, %v204
      %v206 = vlog2.pop %v205
      %v207 = vmul.f32 %v206, 0.6931472
      %v208 = vadd.f32 %v195, %v207
      %v209 = vsub.f32 %v208, %v190
      %vm210 = vcmask 7168
      %211 = vst.msk [vmem:[%s3] sm:$0xff] %vm210, %v209
    $region37: #{tpu_custom_call.1} parent=1 // pred_fallthru
      _
    // Predicated region
    $region38: #{tpu_custom_call.1} parent=1 // pred_check
      _
    $region39: #{tpu_custom_call.1} parent=1 // pred_check_branch
      %213 = sbr.rel (0) target = $region41
    $region40: #{tpu_custom_call.1} parent=1 // pred_region
      _
    $region41: #{tpu_custom_call.1} parent=1 // pred_fallthru
      _
    // Predicated region
    $region42: #{tpu_custom_call.1} parent=1 // pred_check
      _
    $region43: #{tpu_custom_call.1} parent=1 // pred_check_branch
      %215 = sbr.rel (0) target = $region45
    $region44: #{tpu_custom_call.1} parent=1 // pred_region
      _
    $region45: #{tpu_custom_call.1} parent=1 // pred_fallthru
      _
    %216 = vsyncpa [#allocation5], 1
    %217 = vsyncpa [#allocation7], 1

</llo_original>
